<compile_context>
chip_gen: v7x
topology: tpu7x:2x2x1
jax: 0.10.0
libtpu: 0.0.40
codegen_flags: <defaults>
</compile_context>

<pallas_src>
import functools

import jax
import jax.numpy as jnp
from jax import lax
from jax.experimental import pallas as pl
from jax.experimental.pallas import tpu as pltpu


def _round_up(x, m):
    return (x + m - 1) // m * m


def _conv_maxpool_relu_kernel(x_ref, w_ref, b_ref, o_ref, carry_ref, max_ref,
                              *, kernel_size):
    """One (batch_tile, time_tile) grid step.

    x_ref    : (TB, T, C_in)         current time tile, channels-last
    w_ref    : (K*C_in, C_out_pad)   im2col weight, row = k*C_in + ci
    b_ref    : (1, C_out_pad)        bias (added after the pool)
    o_ref    : (TB, C_out_pad)       relu(max_t conv + bias), written at the last t
    carry_ref: (TB, C_ROWS, C_in)    last C_ROWS input rows of the previous tile
    max_ref  : (TB, C_out_pad) f32   running max over time (0-initialized)
    """
    K = kernel_size
    TB, T, C_in = x_ref.shape
    C_ROWS = carry_ref.shape[1]
    S = C_ROWS + T                    # slab rows = carry + tile
    M = TB * S
    M_OUT = S - K + 1                 # slab rows hosting a full K-row window
    C_out_pad = max_ref.shape[-1]
    t = pl.program_id(1)

    @pl.when(t == 0)
    def _init():
        carry_ref[...] = jnp.zeros(carry_ref.shape, carry_ref.dtype)
        # Pre-bias conv max is always >= 0 (padding=K guarantees an all-zero window),
        # so 0 is a safe identity for the running max.
        max_ref[...] = jnp.zeros(max_ref.shape, max_ref.dtype)

    # Slab = carry rows followed by the tile, flattened over batch.  Both pieces are
    # 8-row aligned, so the concat / reshape are pure vreg placement (no re-staging
    # of the whole tile through a scratch buffer).
    slab = jnp.concatenate([carry_ref[...], x_ref[...]], axis=1)      # (TB, S, C_in)
    xf = slab.reshape(M, C_in)

    if C_in % 128 == 0 or K == 1:
        # im2col: K row-shifted copies lane-concatenated -> ONE matmul with
        # contraction K*C_in and a single (M, C_out_pad) f32 result drain.
        chunks = [xf] + [pltpu.roll(xf, shift=M - k, axis=0) for k in range(1, K)]
        lhs = chunks[0] if K == 1 else jnp.concatenate(chunks, axis=1)
        y = jnp.dot(lhs, w_ref[...], preferred_element_type=jnp.float32)
    else:
        # Unaligned C_in: a lane concat would force lane shuffles, so accumulate K tap
        # matmuls instead.  Rolls stay on the narrow (M, C_in) input; the result is
        # still a single (M, C_out_pad) f32 accumulator (no K-wide result, no roll+add
        # on the result path).
        y = jnp.dot(xf, w_ref[0:C_in, :], preferred_element_type=jnp.float32)
        for k in range(1, K):
            xk = pltpu.roll(xf, shift=M - k, axis=0)                  # row i <- xf[i+k]
            y = y + jnp.dot(xk, w_ref[k * C_in:(k + 1) * C_in, :],
                            preferred_element_type=jnp.float32)

    # Mask rows whose window leaks past the slab (they are recomputed as carry rows of
    # the next tile / wrap across batch segments).  Masking with 0 is safe: the true
    # padding=K boundary window is all-zero, so the global max already attains 0.
    y = y.reshape(TB, S, C_out_pad)
    row = lax.broadcasted_iota(jnp.int32, (TB, S, C_out_pad), 1)
    y = jnp.where(row < M_OUT, y, 0.0)

    # One unmasked full-tile running-max update per grid step.
    tile_max = jnp.max(y, axis=1)                                     # (TB, C_out_pad)
    max_ref[...] = jnp.maximum(max_ref[...], tile_max)

    # Carry the last C_ROWS input rows of this tile into the next time step.
    carry_ref[...] = x_ref[:, T - C_ROWS:, :]

    @pl.when(t == pl.num_programs(1) - 1)
    def _finalize():
        pooled = max_ref[...] + b_ref[...].astype(jnp.float32)        # bias after pool
        o_ref[...] = jnp.maximum(pooled, 0.0).astype(o_ref.dtype)


@functools.partial(jax.jit, static_argnames=("kernel_size", "time_tile"))
def conv1d_maxpool_relu(x, weight, bias, *, kernel_size, time_tile=2048):
    """relu(max_t(Conv1d(x, padding=kernel_size))) for x:(B, C_in, L) -> (B, C_out)."""
    B, C_in, L = x.shape
    C_out = weight.shape[0]
    K = kernel_size
    assert weight.shape[1] == C_in and weight.shape[2] == K
    itemsize = x.dtype.itemsize

    # ---- batch tiling: keep >= 2 programs on the parallel axis so v7x's second
    # TensorCore has work (the time axis is sequential and cannot be split).
    TB = min(B, 8)
    nb = -(-B // TB)
    if nb == 1 and B > 1:
        TB = (B + 1) // 2
        nb = -(-B // TB)
    B_pad = TB * nb

    # ---- geometry
    C_out_pad = _round_up(C_out, 128)               # lane-dense output / weight
    C_ROWS = max(8, _round_up(max(K - 1, 1), 8))    # carry rows (>= K-1, 8-aligned)
    KC = K * C_in
    L_pad = L + 2 * K                               # nn.Conv1d(padding=kernel_size)

    # ---- time tile from a chip-aware VMEM budget (lane-padded tiled footprints)
    try:
        vmem_phys = int(pltpu.get_tpu_info().vmem_capacity_bytes)
    except Exception:
        vmem_phys = 64 * 1024 * 1024
    budget = min(max(vmem_phys // 3, 8 * 1024 * 1024), 40 * 1024 * 1024)
    vmem_limit = max(32 * 1024 * 1024, min(vmem_phys * 3 // 4, 96 * 1024 * 1024))
    cin_lane = _round_up(C_in, 128)
    kcin_lane = _round_up(KC, 128)
    per_row = (2 * TB * cin_lane * itemsize         # x block (double-buffered)
               + TB * cin_lane * itemsize           # carry+tile slab value
               + TB * kcin_lane * itemsize          # im2col LHS
               + TB * C_out_pad * 4)                # f32 matmul result
    fixed = (2 * _round_up(KC, 8) * C_out_pad * weight.dtype.itemsize   # weight (2 bufs)
             + TB * C_ROWS * cin_lane * itemsize                        # carry scratch
             + 4 * TB * C_out_pad * 4                                   # max / out / bias
             + 2 * 1024 * 1024)                                         # slack
    t_rows = ((budget - fixed) // per_row) // 8 * 8
    T = min(_round_up(L_pad, 8), _round_up(time_tile, 8), max(t_rows, 8))
    T = max(T, C_ROWS)
    L_row = _round_up(L_pad, T)
    nt = L_row // T

    # ---- operand preparation (XLA may fuse the pad/transpose into the pallas_call)
    x_p = jnp.pad(x, ((0, B_pad - B), (0, 0), (K, K + (L_row - L_pad))))
    x_nlc = jnp.transpose(x_p, (0, 2, 1))                     # (B_pad, L_row, C_in)

    # weight (C_out, C_in, K) -> (K*C_in, C_out_pad) im2col layout, row = k*C_in + ci.
    w_im2col = jnp.transpose(weight, (2, 1, 0)).reshape(KC, C_out)
    w_im2col = jnp.pad(w_im2col, ((0, 0), (0, C_out_pad - C_out)))
    b_pad = jnp.pad(bias, (0, C_out_pad - C_out)).reshape(1, C_out_pad)

    kernel = functools.partial(_conv_maxpool_relu_kernel, kernel_size=K)
    cost = pl.CostEstimate(
        flops=int(2 * B_pad * L_row * KC * C_out_pad),
        transcendentals=0,
        bytes_accessed=int(x_nlc.size * itemsize
                           + w_im2col.size * w_im2col.dtype.itemsize
                           + b_pad.size * b_pad.dtype.itemsize
                           + B_pad * C_out_pad * itemsize))

    out = pl.pallas_call(
        kernel,
        out_shape=jax.ShapeDtypeStruct((nb, TB, C_out_pad), x.dtype),
        grid_spec=pltpu.PrefetchScalarGridSpec(
            num_scalar_prefetch=0,
            grid=(nb, nt),
            in_specs=[
                pl.BlockSpec((TB, T, C_in), lambda b, t: (b, t, 0)),
                # TODO(synk): single-buffer (pipeline_mode=pl.Buffered(1)) the constant
                #             weight/bias blocks once verified on all target chips.
                pl.BlockSpec((KC, C_out_pad), lambda b, t: (0, 0)),
                pl.BlockSpec((1, C_out_pad), lambda b, t: (0, 0)),
            ],
            out_specs=pl.BlockSpec((None, TB, C_out_pad), lambda b, t: (b, 0, 0)),
            scratch_shapes=[
                pltpu.VMEM((TB, C_ROWS, C_in), x.dtype),      # input-row carry
                pltpu.VMEM((TB, C_out_pad), jnp.float32),     # running max over time
            ],
        ),
        compiler_params=pltpu.CompilerParams(
            dimension_semantics=("parallel", "arbitrary"),
            allow_input_fusion=[True, False, False],
            vmem_limit_bytes=int(vmem_limit),
        ),
        cost_estimate=cost,
    )(x_nlc, w_im2col, b_pad)

    return out.reshape(B_pad, C_out_pad)[:B, :C_out]


def _reference(x, weight, bias, kernel_size):
    out = lax.conv_general_dilated(
        x, weight, window_strides=(1,), padding=[(kernel_size, kernel_size)],
        dimension_numbers=("NCH", "OIH", "NCH")) + bias[None, :, None]
    return jnp.maximum(jnp.max(out, axis=-1), 0.0)


if __name__ == "__main__":
    key = jax.random.PRNGKey(0)

    # Case 1: module-like small shapes; time_tile=8 forces 3 time tiles so the carry /
    # running-max path runs, and B=2 exercises the TB-split (grid=(2, 3), TB=1).
    B, C_in, C_out, K, L = 2, 4, 8, 3, 16
    k1, k2, k3, key = jax.random.split(key, 4)
    x = jax.random.normal(k1, (B, C_in, L), jnp.float32)
    w = jax.random.normal(k2, (C_out, C_in, K), jnp.float32) * 0.1
    b = jax.random.normal(k3, (C_out,), jnp.float32) * 0.1
    out = jax.block_until_ready(conv1d_maxpool_relu(x, w, b, kernel_size=K, time_tile=8))
    ref = _reference(x, w, b, K)
    assert out.shape == (B, C_out)
    assert jnp.allclose(out, ref, atol=1e-4, rtol=1e-4), "case 1 mismatch vs reference"

    # Case 2: odd sizes (C_in=5, C_out=7, K=5), two time tiles, padded batch (B=3 -> 4).
    B, C_in, C_out, K, L = 3, 5, 7, 5, 20
    k1, k2, k3, key = jax.random.split(key, 4)
    x = jax.random.normal(k1, (B, C_in, L), jnp.float32)
    w = jax.random.normal(k2, (C_out, C_in, K), jnp.float32) * 0.1
    b = jax.random.normal(k3, (C_out,), jnp.float32) * 0.1
    out = jax.block_until_ready(conv1d_maxpool_relu(x, w, b, kernel_size=K, time_tile=16))
    ref = _reference(x, w, b, K)
    assert out.shape == (B, C_out)
    assert jnp.allclose(out, ref, atol=1e-4, rtol=1e-4), "case 2 mismatch vs reference"

    # Case 3: lane-aligned C_in=128 exercises the single-matmul im2col (lane-concat) path.
    B, C_in, C_out, K, L = 2, 128, 10, 2, 12
    k1, k2, k3, key = jax.random.split(key, 4)
    x = jax.random.normal(k1, (B, C_in, L), jnp.float32)
    w = jax.random.normal(k2, (C_out, C_in, K), jnp.float32) * 0.05
    b = jax.random.normal(k3, (C_out,), jnp.float32) * 0.1
    out = jax.block_until_ready(conv1d_maxpool_relu(x, w, b, kernel_size=K, time_tile=8))
    ref = _reference(x, w, b, K)
    assert out.shape == (B, C_out)
    assert jnp.allclose(out, ref, atol=2e-3, rtol=2e-3), "case 3 mismatch vs reference"

    print("KERNEL_OK")
</pallas_src>

<mosaic_0001>
module attributes {stable_mosaic.version = 11 : i64} {
  func.func @_conv_maxpool_relu_kernel(%arg0: i32, %arg1: i32, %arg2: memref<1x8x4xf32, #tpu.memory_space<vmem>>, %arg3: memref<12x128xf32, #tpu.memory_space<vmem>>, %arg4: memref<1x128xf32, #tpu.memory_space<vmem>>, %arg5: memref<1x1x128xf32, #tpu.memory_space<vmem>>, %arg6: memref<1x8x4xf32, #tpu.memory_space<vmem>>, %arg7: memref<1x128xf32, #tpu.memory_space<vmem>>) attributes {dimension_semantics = [#tpu.dimension_semantics<parallel>, #tpu.dimension_semantics<arbitrary>], iteration_bounds = array<i64: 2, 3>, scalar_prefetch = 0 : i64, scratch_operands = 2 : i64, tpu.core_type = #tpu.core_type<tc>, window_params = [{transform_indices = @transform_0, window_bounds = array<i64: 1, 8, 4>}, {pipeline_mode = #tpu.pipeline_mode<synchronous>, transform_indices = @transform_1, window_bounds = array<i64: 12, 128>}, {pipeline_mode = #tpu.pipeline_mode<synchronous>, transform_indices = @transform_2, window_bounds = array<i64: 1, 128>}, {transform_indices = @transform_3, window_bounds = array<i64: 1, 1, 128>}]} {
    %c0_i32 = arith.constant 0 : i32
    %0 = arith.cmpi eq, %arg1, %c0_i32 : i32
    %1 = arith.extui %0 : i1 to i32
    %c0_i32_0 = arith.constant 0 : i32
    %2 = arith.cmpi ne, %1, %c0_i32_0 : i32
    scf.if %2 {
      %cst_26 = arith.constant 0.000000e+00 : f32
      %32 = vector.broadcast %cst_26 : f32 to vector<1x8x4xf32>
      %c0_27 = arith.constant 0 : index
      %c0_28 = arith.constant 0 : index
      %c0_29 = arith.constant 0 : index
      %33 = vector.load %arg6[%c0_27, %c0_28, %c0_29] : memref<1x8x4xf32, #tpu.memory_space<vmem>>, vector<1x8x4xf32>
      tpu.vector_store %arg6[%c0_27, %c0_28, %c0_29], %32 {strides = array<i32>} : memref<1x8x4xf32, #tpu.memory_space<vmem>>, vector<1x8x4xf32>,
      %cst_30 = arith.constant 0.000000e+00 : f32
      %34 = vector.broadcast %cst_30 : f32 to vector<1x128xf32>
      %c0_31 = arith.constant 0 : index
      %c0_32 = arith.constant 0 : index
      %35 = vector.load %arg7[%c0_31, %c0_32] : memref<1x128xf32, #tpu.memory_space<vmem>>, vector<1x128xf32>
      tpu.vector_store %arg7[%c0_31, %c0_32], %34 {strides = array<i32>} : memref<1x128xf32, #tpu.memory_space<vmem>>, vector<1x128xf32>,
    } else {
    }
    %c0 = arith.constant 0 : index
    %c0_1 = arith.constant 0 : index
    %c0_2 = arith.constant 0 : index
    %3 = vector.load %arg6[%c0, %c0_1, %c0_2] : memref<1x8x4xf32, #tpu.memory_space<vmem>>, vector<1x8x4xf32>
    %c0_3 = arith.constant 0 : index
    %c0_4 = arith.constant 0 : index
    %c0_5 = arith.constant 0 : index
    %4 = vector.load %arg2[%c0_3, %c0_4, %c0_5] : memref<1x8x4xf32, #tpu.memory_space<vmem>>, vector<1x8x4xf32>
    %5 = tpu.concatenate %3, %4 in 1 : vector<1x8x4xf32>, vector<1x8x4xf32> -> vector<1x16x4xf32>
    %6 = vector.shape_cast %5 : vector<1x16x4xf32> to vector<16x4xf32>
    %c0_6 = arith.constant 0 : index
    %c0_7 = arith.constant 0 : index
    %7 = vector.load %arg3[%c0_6, %c0_7] : memref<12x128xf32, #tpu.memory_space<vmem>>, vector<4x128xf32>
    %cst = arith.constant dense<0.000000e+00> : vector<16x128xf32>
    %8 = tpu.matmul %6, %7, %cst {dimension_numbers = #tpu.dot_dimension_numbers<[1], [0], [0], [1], [0, 0, 1, 1], [], []>} : vector<16x4xf32>, vector<4x128xf32>, vector<16x128xf32> -> vector<16x128xf32>
    %c15_i32 = arith.constant 15 : i32
    %9 = tpu.dynamic_rotate %6 by %c15_i32 dim 0 : vector<16x4xf32>, i32 -> vector<16x4xf32>
    %c4 = arith.constant 4 : index
    %c0_8 = arith.constant 0 : index
    %10 = vector.load %arg3[%c4, %c0_8] : memref<12x128xf32, #tpu.memory_space<vmem>>, vector<4x128xf32>
    %cst_9 = arith.constant dense<0.000000e+00> : vector<16x128xf32>
    %11 = tpu.matmul %9, %10, %cst_9 {dimension_numbers = #tpu.dot_dimension_numbers<[1], [0], [0], [1], [0, 0, 1, 1], [], []>} : vector<16x4xf32>, vector<4x128xf32>, vector<16x128xf32> -> vector<16x128xf32>
    %12 = arith.addf %8, %11 : vector<16x128xf32>
    %c14_i32 = arith.constant 14 : i32
    %13 = tpu.dynamic_rotate %6 by %c14_i32 dim 0 : vector<16x4xf32>, i32 -> vector<16x4xf32>
    %c8 = arith.constant 8 : index
    %c0_10 = arith.constant 0 : index
    %14 = vector.load %arg3[%c8, %c0_10] : memref<12x128xf32, #tpu.memory_space<vmem>>, vector<4x128xf32>
    %cst_11 = arith.constant dense<0.000000e+00> : vector<16x128xf32>
    %15 = tpu.matmul %13, %14, %cst_11 {dimension_numbers = #tpu.dot_dimension_numbers<[1], [0], [0], [1], [0, 0, 1, 1], [], []>} : vector<16x4xf32>, vector<4x128xf32>, vector<16x128xf32> -> vector<16x128xf32>
    %16 = arith.addf %12, %15 : vector<16x128xf32>
    %17 = vector.shape_cast %16 : vector<16x128xf32> to vector<1x16x128xf32>
    %18 = tpu.iota {dimensions = array<i32: 1>} : vector<1x16x128xi32>
    %c14_i32_12 = arith.constant 14 : i32
    %19 = vector.broadcast %c14_i32_12 : i32 to vector<1x16x128xi32>
    %20 = arith.cmpi slt, %18, %19 : vector<1x16x128xi32>
    %cst_13 = arith.constant 0.000000e+00 : f32
    %21 = vector.broadcast %cst_13 : f32 to vector<1x16x128xf32>
    %22 = arith.select %20, %17, %21 : vector<1x16x128xi1>, vector<1x16x128xf32>
    %cst_14 = arith.constant dense<0xFF800000> : vector<1x128xf32>
    %23 = vector.multi_reduction <maximumf>, %22, %cst_14 [1] : vector<1x16x128xf32> to vector<1x128xf32>
    %c0_15 = arith.constant 0 : index
    %c0_16 = arith.constant 0 : index
    %24 = vector.load %arg7[%c0_15, %c0_16] : memref<1x128xf32, #tpu.memory_space<vmem>>, vector<1x128xf32>
    %25 = arith.maximumf %24, %23 : vector<1x128xf32>
    %c0_17 = arith.constant 0 : index
    %c0_18 = arith.constant 0 : index
    %26 = vector.load %arg7[%c0_17, %c0_18] : memref<1x128xf32, #tpu.memory_space<vmem>>, vector<1x128xf32>
    tpu.vector_store %arg7[%c0_17, %c0_18], %25 {strides = array<i32>} : memref<1x128xf32, #tpu.memory_space<vmem>>, vector<1x128xf32>,
    %c0_19 = arith.constant 0 : index
    %c0_20 = arith.constant 0 : index
    %c0_21 = arith.constant 0 : index
    %27 = vector.load %arg2[%c0_19, %c0_20, %c0_21] : memref<1x8x4xf32, #tpu.memory_space<vmem>>, vector<1x8x4xf32>
    %c0_22 = arith.constant 0 : index
    %c0_23 = arith.constant 0 : index
    %c0_24 = arith.constant 0 : index
    %28 = vector.load %arg6[%c0_22, %c0_23, %c0_24] : memref<1x8x4xf32, #tpu.memory_space<vmem>>, vector<1x8x4xf32>
    tpu.vector_store %arg6[%c0_22, %c0_23, %c0_24], %27 {strides = array<i32>} : memref<1x8x4xf32, #tpu.memory_space<vmem>>, vector<1x8x4xf32>,
    %c2_i32 = arith.constant 2 : i32
    %29 = arith.cmpi eq, %arg1, %c2_i32 : i32
    %30 = arith.extui %29 : i1 to i32
    %c0_i32_25 = arith.constant 0 : i32
    %31 = arith.cmpi ne, %30, %c0_i32_25 : i32
    scf.if %31 {
      %c0_26 = arith.constant 0 : index
      %c0_27 = arith.constant 0 : index
      %32 = vector.load %arg7[%c0_26, %c0_27] : memref<1x128xf32, #tpu.memory_space<vmem>>, vector<1x128xf32>
      %c0_28 = arith.constant 0 : index
      %c0_29 = arith.constant 0 : index
      %33 = vector.load %arg4[%c0_28, %c0_29] : memref<1x128xf32, #tpu.memory_space<vmem>>, vector<1x128xf32>
      %34 = arith.addf %32, %33 : vector<1x128xf32>
      %cst_30 = arith.constant 0.000000e+00 : f32
      %35 = vector.broadcast %cst_30 : f32 to vector<1x128xf32>
      %36 = arith.maximumf %34, %35 : vector<1x128xf32>
      %c0_31 = arith.constant 0 : index
      %c0_32 = arith.constant 0 : index
      %c0_33 = arith.constant 0 : index
      %37 = vector.load %arg5[%c0_31, %c0_32, %c0_33] : memref<1x1x128xf32, #tpu.memory_space<vmem>>, vector<1x1x128xf32>
      %38 = vector.shape_cast %37 : vector<1x1x128xf32> to vector<1x128xf32>
      %39 = vector.shape_cast %36 : vector<1x128xf32> to vector<1x1x128xf32>
      tpu.vector_store %arg5[%c0_31, %c0_32, %c0_33], %39 {strides = array<i32>} : memref<1x1x128xf32, #tpu.memory_space<vmem>>, vector<1x1x128xf32>,
    } else {
    }
    return
  }
  func.func @transform_0(%arg0: i32, %arg1: i32) -> (i32, i32, i32) {
    %c0_i32 = arith.constant 0 : i32
    %c0_i32_0 = arith.constant 0 : i32
    return %arg0, %arg1, %c0_i32 : i32, i32, i32
  }
  func.func @transform_1(%arg0: i32, %arg1: i32) -> (i32, i32) {
    %c0_i32 = arith.constant 0 : i32
    %c0_i32_0 = arith.constant 0 : i32
    %c0_i32_1 = arith.constant 0 : i32
    return %c0_i32, %c0_i32_0 : i32, i32
  }
  func.func @transform_2(%arg0: i32, %arg1: i32) -> (i32, i32) {
    %c0_i32 = arith.constant 0 : i32
    %c0_i32_0 = arith.constant 0 : i32
    %c0_i32_1 = arith.constant 0 : i32
    return %c0_i32, %c0_i32_0 : i32, i32
  }
  func.func @transform_3(%arg0: i32, %arg1: i32) -> (i32, i32, i32) {
    %c0_i32 = arith.constant 0 : i32
    %c0_i32_0 = arith.constant 0 : i32
    %c0_i32_1 = arith.constant 0 : i32
    return %arg0, %c0_i32, %c0_i32_0 : i32, i32, i32
  }
}

</mosaic_0001>

<llo_original>
// kernel: conv1d_maxpool_relu.2
$region0: #{conv1d_maxpool_relu.2}
  #allocation0 [shape = 'u32[]', space=smem, size = 0x4, offset = 0x4, fixed_abs, tag = 'smem constant byte address 0x4 - core index']
  #allocation1 [shape = 'u32[144,128]{1,0:T(1,128)}', space=vmem, size = 0x12000, scoped, tag = 'internal scratch']
  #allocation2 [shape = 'f32[1,8,4]{2,1,0:T(8,128)}', space=vmem, size = 0x1000, scoped, tag = 'scratch operand']
  #allocation3 [shape = 'f32[1,128]{1,0:T(1,128)}', space=vmem, size = 0x200, scoped, tag = 'scratch operand']
  #allocation4 [shape = 'u32[2048]{0}', space=vmem, size = 0x2000, scoped, tag = 'scoped memory for conv1d_maxpool_relu.2']
  #allocation5 [shape = 'u32[2048]{0}', space=vmem, size = 0x2000, scoped, tag = 'scoped memory for conv1d_maxpool_relu.2']
  #allocation6 [shape = 'u32[2048]{0}', space=vmem, size = 0x2000, scoped, tag = 'scoped memory for conv1d_maxpool_relu.2']
  #allocation7 [shape = 'u32[2048]{0}', space=vmem, size = 0x2000, scoped, tag = 'scoped memory for conv1d_maxpool_relu.2']
  #allocation8 [shape = 'u32[2048]{0}', space=vmem, size = 0x2000, scoped, tag = 'scoped memory for conv1d_maxpool_relu.2']
  %s0 = inlined_call_operand.vmem [shape: f32[12,128], index: 0, kind: input, shape index: {}]
  %s1 = inlined_call_operand.vmem [shape: f32[1,128], index: 1, kind: input, shape index: {}]
  %s2 = inlined_call_operand.vmem [shape: f32[2,4,16], index: 2, kind: input, shape index: {}]
  %s3 = inlined_call_operand.<no memory space> [shape: f32[], index: 3, kind: input, shape index: {}]
  %s4 = inlined_call_operand.hbm [shape: f32[2,1,128], index: 4, kind: output, shape index: {}]
  %s5 = sld [smem:[#allocation0]]
  $region53: #{conv1d_maxpool_relu.2} parent=0
    _
  %s7 = ssub.s32 1, %s5
  %s8 = scalar_select 0, %s7, %s5
  %v9 = vstv %s3
  $region1: #{conv1d_maxpool_relu.2} parent=0
    #allocation9 [shape = 'u8[1024]{0}', space=vmem, size = 0x400, scoped, tag = 'output window, operand 0']
    #allocation10 [shape = 's32[2]{0}', space=sflag, size = 0x8, scoped, tag = 'scoped memory for conv1d_maxpool_relu.2']
    %10 = vsyncpa [#allocation10], 0
    %s11 = scalar_lea.sflag [#allocation10], 1
    %12 = vsyncpa %s11, 0
    loop: start=0, step=1, limit=8
    $region2: #{conv1d_maxpool_relu.2} parent=1 // loop_pre_header
      _
    $region3: #{conv1d_maxpool_relu.2} parent=1 // loop_header
      %s14 = sphi 0, %s18
      %p15 = scmp.ge.s32.totalorder %s14, 8
      %s21 = sphi 0, %s33
      %s22 = sphi 0, %s29
      %s23 = sphi 0, %s21
      %s24 = sphi 0, %s22
      %s25 = sphi 0, %s23
      %s26 = sphi 0, %s24
      %s38 = sphi 0, %s40
      %s41 = sphi 0, %s38
      %s42 = sphi 0, %s41
      %s58 = sphi 0, %s42
      %s62 = sphi 0, %s62
      %s64 = sphi 0, %s62
      %s65 = sphi 0, %s64
      %s79 = sphi 0, %s65
      %s83 = sphi 0, %s83
      %s85 = sphi 0, %s83
      %s86 = sphi 0, %s85
      %s100 = sphi 0, %s86
      %s106 = sphi 0, %s108
      %s109 = sphi 0, %s106
      %s110 = sphi 0, %s109
      %s126 = sphi 0, %s110
    $region4: #{conv1d_maxpool_relu.2} parent=1 // loop_header_branch
      %17 = sbr.rel (%p15) target = $region8
    $region5: #{conv1d_maxpool_relu.2} parent=1 // loop_body
      %s19 = ssub.s32 %s14, 1
      %s20 = ssub.s32 %s14, 2
      %s27 = sadd.s32 1, %s22
      %p28 = scmp.ge.s32.totalorder %s27, 3
      %s29 = scalar_select %p28, 0, %s27
      %s30 = sadd.s32 1, %s21
      %s31 = scalar_select %p28, %s30, %s21
      %p32 = scmp.ge.s32.totalorder %s31, 2
      %s33 = scalar_select %p32, 0, %s31
      %s34 = ssub.s32 %s21, %s33
      %s35 = ssub.s32 %s22, %s29
      %s36 = sor.u32 %s34, %s35
      %p37 = scmp.eq.s32.totalorder %s36, 0
      %s39 = sadd.s32 %s38, 1
      %s40 = scalar_select %p37, %s38, %s39
      %p43 = pneg %p37
      %p44 = scmp.eq.s32.totalorder %s14, 5
      %p45 = por %p43, %p44
      %p46 = scmp.ne.s32.totalorder %s38, %s41
      %p47 = scmp.eq.s32.totalorder %s14, 0
      %p48 = por %p46, %p47
      %p49 = scmp.ne.s32.totalorder %s38, %s41
      %p50 = scmp.eq.s32.totalorder %s19, 5
      %p51 = por %p49, %p50
      %p52 = scmp.ne.s32.totalorder %s41, %s42
      %p53 = scmp.eq.s32.totalorder %s19, 0
      %p54 = por %p52, %p53
      %p55 = scmp.ne.s32.totalorder %s41, %s42
      %p56 = scmp.eq.s32.totalorder %s20, 5
      %p57 = por %p55, %p56
      %p59 = scmp.ne.s32.totalorder %s42, %s58
      %p60 = scmp.eq.s32.totalorder %s20, 0
      %p61 = por %p59, %p60
      %s63 = sadd.s32 %s62, 1
      %p66 = scmp.eq.s32.totalorder %s14, 5
      %p67 = scmp.ne.s32.totalorder %s62, %s64
      %p68 = scmp.eq.s32.totalorder %s14, 0
      %p69 = por %p67, %p68
      %p70 = scmp.ne.s32.totalorder %s62, %s64
      %p71 = scmp.eq.s32.totalorder %s19, 5
      %p72 = por %p70, %p71
      %p73 = scmp.ne.s32.totalorder %s64, %s65
      %p74 = scmp.eq.s32.totalorder %s19, 0
      %p75 = por %p73, %p74
      %p76 = scmp.ne.s32.totalorder %s64, %s65
      %p77 = scmp.eq.s32.totalorder %s20, 5
      %p78 = por %p76, %p77
      %p80 = scmp.ne.s32.totalorder %s65, %s79
      %p81 = scmp.eq.s32.totalorder %s20, 0
      %p82 = por %p80, %p81
      %s84 = sadd.s32 %s83, 1
      %p87 = scmp.eq.s32.totalorder %s14, 5
      %p88 = scmp.ne.s32.totalorder %s83, %s85
      %p89 = scmp.eq.s32.totalorder %s14, 0
      %p90 = por %p88, %p89
      %p91 = scmp.ne.s32.totalorder %s83, %s85
      %p92 = scmp.eq.s32.totalorder %s19, 5
      %p93 = por %p91, %p92
      %p94 = scmp.ne.s32.totalorder %s85, %s86
      %p95 = scmp.eq.s32.totalorder %s19, 0
      %p96 = por %p94, %p95
      %p97 = scmp.ne.s32.totalorder %s85, %s86
      %p98 = scmp.eq.s32.totalorder %s20, 5
      %p99 = por %p97, %p98
      %p101 = scmp.ne.s32.totalorder %s86, %s100
      %p102 = scmp.eq.s32.totalorder %s20, 0
      %p103 = por %p101, %p102
      %s104 = ssub.s32 %s21, %s33
      %p105 = scmp.eq.s32.totalorder %s104, 0
      %s107 = sadd.s32 %s106, 1
      %s108 = scalar_select %p105, %s106, %s107
      %p111 = pneg %p105
      %p112 = scmp.eq.s32.totalorder %s14, 5
      %p113 = por %p111, %p112
      %p114 = scmp.ne.s32.totalorder %s106, %s109
      %p115 = scmp.eq.s32.totalorder %s14, 0
      %p116 = por %p114, %p115
      %p117 = scmp.ne.s32.totalorder %s106, %s109
      %p118 = scmp.eq.s32.totalorder %s19, 5
      %p119 = por %p117, %p118
      %p120 = scmp.ne.s32.totalorder %s109, %s110
      %p121 = scmp.eq.s32.totalorder %s19, 0
      %p122 = por %p120, %p121
      %p123 = scmp.ne.s32.totalorder %s109, %s110
      %p124 = scmp.eq.s32.totalorder %s20, 5
      %p125 = por %p123, %p124
      %p127 = scmp.ne.s32.totalorder %s110, %s126
      %p128 = scmp.eq.s32.totalorder %s20, 0
      %p129 = por %p127, %p128
      %p130 = scmp.le.s32.totalorder 1, %s14
      %p131 = scmp.lt.s32.totalorder %s14, 7
      %p132 = pnand %p130, %p131
      %p133 = pneg %p132
      // Predicated region
      $region9: #{conv1d_maxpool_relu.2} parent=5 // pred_check
        _
      $region10: #{conv1d_maxpool_relu.2} parent=5 // pred_check_branch
        %135 = sbr.rel (%p132) target = $region12
      $region11: #{conv1d_maxpool_relu.2} parent=5 // pred_region
        %s136 = ssub.s32 %s14, 1
        // Predicated region
        $region13: #{conv1d_maxpool_relu.2} parent=11 // pred_check
          %p137 = pneg %p75
        $region14: #{conv1d_maxpool_relu.2} parent=11 // pred_check_branch
          %139 = sbr.rel (%p137) target = $region16
        $region15: #{conv1d_maxpool_relu.2} parent=11 // pred_region
          _
        $region16: #{conv1d_maxpool_relu.2} parent=11 // pred_fallthru
          _
        // Predicated region
        $region17: #{conv1d_maxpool_relu.2} parent=11 // pred_check
          %p140 = pneg %p96
        $region18: #{conv1d_maxpool_relu.2} parent=11 // pred_check_branch
          %142 = sbr.rel (%p140) target = $region20
        $region19: #{conv1d_maxpool_relu.2} parent=11 // pred_region
          _
        $region20: #{conv1d_maxpool_relu.2} parent=11 // pred_fallthru
          _
      $region12: #{conv1d_maxpool_relu.2} parent=5 // pred_fallthru
        _
      %p143 = scmp.lt.s32.totalorder %s14, 6
      // Predicated region
      $region21: #{conv1d_maxpool_relu.2} parent=5 // pred_check
        %p144 = pneg %p143
      $region22: #{conv1d_maxpool_relu.2} parent=5 // pred_check_branch
        %146 = sbr.rel (%p144) target = $region24
      $region23: #{conv1d_maxpool_relu.2} parent=5 // pred_region
        // Predicated region
        $region25: #{conv1d_maxpool_relu.2} parent=23 // pred_check
          %p147 = pneg %p48
        $region26: #{conv1d_maxpool_relu.2} parent=23 // pred_check_branch
          %149 = sbr.rel (%p147) target = $region28
        $region27: #{conv1d_maxpool_relu.2} parent=23 // pred_region
          %s150 = ssub.s32 1, %s22
          %p151 = scmp.gt.s32.totalorder %s150, 0
          %s152 = scalar_select %p151, %s150, 0
          %s153 = ssub.s32 3, %s22
          %p154 = scmp.lt.s32.totalorder %s153, 2
          %s155 = scalar_select %p154, %s153, 2
          %s156 = ssub.s32 %s155, %s152
          %s157 = smul.u32 128, %s156
          %p158 = scmp.lt.s32.totalorder %s21, 1
          %s159 = scalar_select %p158, %s21, 1
          %s160 = ssub.s32 %s22, 1
          %p161 = scmp.lt.s32.totalorder %s160, 1
          %s162 = scalar_select %p161, %s160, 1
          %s163 = smul.addr %s159, 2
          %s164 = sadd.s32 %s162, %s163
          %s165 = smul.addr %s164, 8
          %s166 = scalar_lea.vmem %s2, %s165
          %s167 = ssub.s32 1, %s22
          %p168 = scmp.gt.s32.totalorder %s167, 0
          %s169 = scalar_select %p168, %s167, 0
          %s170 = ssub.s32 3, %s22
          %p171 = scmp.lt.s32.totalorder %s170, 2
          %s172 = scalar_select %p171, %s170, 2
          %s173 = ssub.s32 %s172, %s169
          %s174 = smul.u32 128, %s173
        $region28: #{conv1d_maxpool_relu.2} parent=23 // pred_fallthru
          _
      $region24: #{conv1d_maxpool_relu.2} parent=5 // pred_fallthru
        _
      %p175 = scmp.le.s32.totalorder 1, %s14
      %p176 = scmp.lt.s32.totalorder %s14, 7
      %p177 = pnand %p175, %p176
      %p178 = pneg %p177
      // Predicated region
      $region29: #{conv1d_maxpool_relu.2} parent=5 // pred_check
        _
      $region30: #{conv1d_maxpool_relu.2} parent=5 // pred_check_branch
        %180 = sbr.rel (%p177) target = $region32
      $region31: #{conv1d_maxpool_relu.2} parent=5 // pred_region
        #allocation11 [shape = 'u8[4096]{0}', space=vmem, size = 0x1000, dematerialized = true, scoped, tag = 'FusionAdapter Buffer %fusion.1 = f32[2,24,4]{2,1,0:T(8,128)} fusion(%param_2.2, %param_3), kind=kLoop, calls=%fused_computation.1.clone, metadata={op_name="jit(conv1d_maxpool_relu)/transpose" stack_frame_id=8}']
        %s181 = ssub.s32 %s14, 1
        %s182 = ssub.s32 1, %s24
        %p183 = scmp.gt.s32.totalorder %s182, 0
        %s184 = scalar_select %p183, %s182, 0
        %s185 = ssub.s32 3, %s24
        %p186 = scmp.lt.s32.totalorder %s185, 2
        %s187 = scalar_select %p186, %s185, 2
        %s188 = ssub.s32 %s187, %s184
        %s189 = smul.u32 128, %s188
        %p190 = scmp.lt.s32.totalorder %s23, 1
        %s191 = scalar_select %p190, %s23, 1
        %s192 = ssub.s32 %s24, 1
        %p193 = scmp.lt.s32.totalorder %s192, 1
        %s194 = scalar_select %p193, %s192, 1
        %s195 = smul.addr %s191, 2
        %s196 = sadd.s32 %s194, %s195
        %s197 = smul.addr %s196, 8
        %s198 = scalar_lea.vmem %s2, %s197
        %p199 = pneg %p54
        %p200 = pneg %p51
        %p201 = pneg %p75
        %p202 = pneg %p72
        %p203 = pneg %p96
        %p204 = pneg %p93
        %p205 = pneg %p122
        %p206 = pneg %p119
        %s207 = sand.u32 %s109, 1
        %s208 = scalar_lea.sflag [#allocation10], %s207
        %s209 = sand.u32 %s109, 1
        %s210 = scalar_lea.vmem [#allocation9], %s209
        %s211 = ssub.s32 1, %s24
        %p212 = scmp.gt.s32.totalorder %s211, 0
        %s213 = scalar_select %p212, %s211, 0
        %s214 = ssub.s32 3, %s24
        %p215 = scmp.lt.s32.totalorder %s214, 2
        %s216 = scalar_select %p215, %s214, 2
        %s217 = ssub.s32 %s216, %s213
        %s218 = smul.u32 128, %s217
        %p219 = scmp.lt.s32.totalorder %s23, 1
        %s220 = scalar_select %p219, %s23, 1
        %s221 = ssub.s32 %s24, 1
        %p222 = scmp.lt.s32.totalorder %s221, 1
        %s223 = scalar_select %p222, %s221, 1
        %s224 = smul.addr %s220, 2
        %s225 = sadd.s32 %s223, %s224
        %s226 = smul.addr %s225, 8
        %s227 = scalar_lea.vmem %s2, %s226
        %s228 = ssub.s32 1, %s24
        %p229 = scmp.gt.s32.totalorder %s228, 0
        %s230 = scalar_select %p229, %s228, 0
        %s231 = ssub.s32 3, %s24
        %p232 = scmp.lt.s32.totalorder %s231, 2
        %s233 = scalar_select %p232, %s231, 2
        %s234 = ssub.s32 %s233, %s230
        %s235 = smul.u32 128, %s234
        %s236 = ssub.s32 %s24, 1
        %s237 = ssub.s32 2, %s24
        %s238 = sor.u32 %s236, %s237
        %p239 = scmp.lt.s32.totalorder %s238, 0
        %s240 = scalar_select %p239, 0, 255
        %v241 = vld [vmem:[%s227] sm:%s240]
        %s242 = ssub.s32 %s24, 1
        %s243 = ssub.s32 2, %s24
        %s244 = sor.u32 %s242, %s243
        %v245 = vstv %s244
        %vm246 = vcmp.lt.s32.totalorder %v245, 0
        %v247 = vsel %vm246, %v9, %v241
        %v248 = vlaneseq
        %v249 = vand.u32 %v248, 127
        %vm251 = vcmp.lt.s32.totalorder %v249, 4
        %v252 = vsel %vm251, %v247, %v9
        %s253 = scalar_lea.vmem %s227, 8
        %s254 = sadd.s32 %s24, 1
        %s255 = ssub.s32 %s254, 1
        %s256 = ssub.s32 2, %s254
        %s257 = sor.u32 %s255, %s256
        %p258 = scmp.lt.s32.totalorder %s257, 0
        %s259 = scalar_select %p258, 0, 255
        %v260 = vld [vmem:[%s253] sm:%s259]
        %s261 = sadd.s32 %s24, 1
        %s262 = ssub.s32 %s261, 1
        %s263 = ssub.s32 2, %s261
        %s264 = sor.u32 %s262, %s263
        %v265 = vstv %s264
        %vm266 = vcmp.lt.s32.totalorder %v265, 0
        %v267 = vsel %vm266, %v9, %v260
        %v268 = vlaneseq
        %v269 = vand.u32 %v268, 127
        %vm271 = vcmp.lt.s32.totalorder %v269, 4
        %v272 = vsel %vm271, %v267, %v9
        %vm273 = vcmask 1044480
        %v274 = vsel %vm273, %v272, %v252
        %v275 = vrot.slane %v274, 5
        %277 = vst [vmem:[#allocation11] sm:$0xff] %v275
        %p278 = scmp.eq.s32.totalorder %s24, 0
        // Predicated region
        $region33: #{conv1d_maxpool_relu.2} parent=31 // pred_check
          %p279 = pneg %p278
        $region34: #{conv1d_maxpool_relu.2} parent=31 // pred_check_branch
          %281 = sbr.rel (%p279) target = $region36
        $region35: #{conv1d_maxpool_relu.2} parent=31 // pred_region
          %vm282 = vcmask 31744
          %283 = vst.msk [vmem:[#allocation2] sm:$0xff] %vm282, 0.0
          %284 = vst [vmem:[#allocation3] sm:$0x1] 0.0
        $region36: #{conv1d_maxpool_relu.2} parent=31 // pred_fallthru
          _
        %v285 = vld [vmem:[#allocation2] sm:$0xff]
        %v286 = vld [vmem:[#allocation11] sm:$0xff]
        %v287 = vld [vmem:[%s0] sm:$0xf]
        %v288 = vrot.slane %v285, 1
        %v289 = vrot.slane %v286, 1
        %v290 = vlaneseq
        %v291 = vshrl.u32 %v290, 7
        %vm292 = vcmp.lt.s32.totalorder %v291, 7
        %v293 = vsel %vm292, %v288, %v289
        %v294 = vsel %vm292, %v289, %v288
        %v295 = vld [vmem:[%s0 + $0x4] sm:$0xf]
        %vm296 = vcmask 31744
        %v298 = vsel %vm296, %v293, 0
        %v301 = vsel %vm296, %v294, 0
        %vm303 = vcmask 1043456
        %v305 = vsel %vm303, %v295, 0
        %307 = vmatprep.subr.mxu0 0.0
        %308 = vmatpush1.msra.mxu0 %v305
        %309 = vmatprep.subr.mxu0 0.0
        %310 = vmatpush1.msra.mxu0 0.0
        %311 = vmatprep.subr.mxu0 0.0
        %312 = vmatpush1.msra.mxu0 0.0
        %313 = vmatprep.subr.mxu0 0.0
        %314 = vmatpush1.msra.mxu0 0.0
        %315 = vmatprep.subr.mxu0 0.0
        %316 = vmatpush1.msra.mxu0 0.0
        %317 = vmatprep.subr.mxu0 0.0
        %318 = vmatpush1.msra.mxu0 0.0
        %319 = vmatprep.subr.mxu0 0.0
        %320 = vmatpush1.msra.mxu0 0.0
        %321 = vmatprep.subr.mxu0 0.0
        %322 = vmatpush1.msra.mxu0 0.0
        %323 = vmatprep.subr.mxu0 0.0
        %324 = vmatpush1.msra.mxu0 0.0
        %325 = vmatprep.subr.mxu0 0.0
        %326 = vmatpush1.msra.mxu0 0.0
        %327 = vmatprep.subr.mxu0 0.0
        %328 = vmatpush1.msra.mxu0 0.0
        %329 = vmatprep.subr.mxu0 0.0
        %330 = vmatpush1.msra.mxu0 0.0
        %331 = vmatprep.subr.mxu0 0.0
        %332 = vmatpush1.msra.mxu0 0.0
        %333 = vmatprep.subr.mxu0 0.0
        %334 = vmatpush1.msra.mxu0 0.0
        %335 = vmatprep.subr.mxu0 0.0
        %336 = vmatpush1.msra.mxu0 0.0
        %337 = vmatprep.subr.mxu0 0.0
        %338 = vmatpush1.msra.mxu0 0.0
        %339 = vmatprep.subr.mxu0 0.0
        %340 = vmatpush1.msra.mxu0 0.0
        %341 = vmatprep.subr.mxu0 0.0
        %342 = vmatpush1.msra.mxu0 0.0
        %343 = vmatprep.subr.mxu0 0.0
        %344 = vmatpush1.msra.mxu0 0.0
        %345 = vmatprep.subr.mxu0 0.0
        %346 = vmatpush1.msra.mxu0 0.0
        %347 = vmatprep.subr.mxu0 0.0
        %348 = vmatpush1.msra.mxu0 0.0
        %349 = vmatprep.subr.mxu0 0.0
        %350 = vmatpush1.msra.mxu0 0.0
        %351 = vmatprep.subr.mxu0 0.0
        %352 = vmatpush1.msra.mxu0 0.0
        %353 = vmatprep.subr.mxu0 0.0
        %354 = vmatpush1.msra.mxu0 0.0
        %355 = vmatprep.subr.mxu0 0.0
        %356 = vmatpush1.msra.mxu0 0.0
        %357 = vmatprep.subr.mxu0 0.0
        %358 = vmatpush1.msra.mxu0 0.0
        %359 = vmatprep.subr.mxu0 0.0
        %360 = vmatpush1.msra.mxu0 0.0
        %361 = vmatprep.subr.mxu0 0.0
        %362 = vmatpush1.msra.mxu0 0.0
        %363 = vmatprep.subr.mxu0 0.0
        %364 = vmatpush1.msra.mxu0 0.0
        %365 = vmatprep.subr.mxu0 0.0
        %366 = vmatpush1.msra.mxu0 0.0
        %367 = vmatprep.subr.mxu0 0.0
        %368 = vmatpush1.msra.mxu0 0.0
        %369 = vmatprep.subr.mxu0 0.0
        %370 = vmatpush1.msra.mxu0 0.0
        %371 = vmatprep.mubr.f32.mxu0 0.0
        %372 = vmatmul.mubr.f32.gmra.mrb[0].mxu0 %v298
        %v373 = vpop.f32.mrb[0].mxu0
        %v374 = vadd.f32 0.0, %v373
        %v375 = vpop.f32.mrb[0].mxu0
        %376 = vmatprep.mubr.f32.mxu0 0.0
        %377 = vmatmul.mubr.f32.gmra.mrb[0].mxu0 %v301
        %v378 = vpop.f32.mrb[0].mxu0
        %v379 = vadd.f32 0.0, %v378
        %v380 = vpop.f32.mrb[0].mxu0
        %381 = vdwg.mxu0
        %v383 = vsel %vm296, %v285, 0
        %v386 = vsel %vm296, %v286, 0
        %v389 = vsel %vm303, %v287, 0
        %391 = vmatprep.subr.mxu0 0.0
        %392 = vmatpush1.msra.mxu0 %v389
        %393 = vmatprep.subr.mxu0 0.0
        %394 = vmatpush1.msra.mxu0 0.0
        %395 = vmatprep.subr.mxu0 0.0
        %396 = vmatpush1.msra.mxu0 0.0
        %397 = vmatprep.subr.mxu0 0.0
        %398 = vmatpush1.msra.mxu0 0.0
        %399 = vmatprep.subr.mxu0 0.0
        %400 = vmatpush1.msra.mxu0 0.0
        %401 = vmatprep.subr.mxu0 0.0
        %402 = vmatpush1.msra.mxu0 0.0
        %403 = vmatprep.subr.mxu0 0.0
        %404 = vmatpush1.msra.mxu0 0.0
        %405 = vmatprep.subr.mxu0 0.0
        %406 = vmatpush1.msra.mxu0 0.0
        %407 = vmatprep.subr.mxu0 0.0
        %408 = vmatpush1.msra.mxu0 0.0
        %409 = vmatprep.subr.mxu0 0.0
        %410 = vmatpush1.msra.mxu0 0.0
        %411 = vmatprep.subr.mxu0 0.0
        %412 = vmatpush1.msra.mxu0 0.0
        %413 = vmatprep.subr.mxu0 0.0
        %414 = vmatpush1.msra.mxu0 0.0
        %415 = vmatprep.subr.mxu0 0.0
        %416 = vmatpush1.msra.mxu0 0.0
        %417 = vmatprep.subr.mxu0 0.0
        %418 = vmatpush1.msra.mxu0 0.0
        %419 = vmatprep.subr.mxu0 0.0
        %420 = vmatpush1.msra.mxu0 0.0
        %421 = vmatprep.subr.mxu0 0.0
        %422 = vmatpush1.msra.mxu0 0.0
        %423 = vmatprep.subr.mxu0 0.0
        %424 = vmatpush1.msra.mxu0 0.0
        %425 = vmatprep.subr.mxu0 0.0
        %426 = vmatpush1.msra.mxu0 0.0
        %427 = vmatprep.subr.mxu0 0.0
        %428 = vmatpush1.msra.mxu0 0.0
        %429 = vmatprep.subr.mxu0 0.0
        %430 = vmatpush1.msra.mxu0 0.0
        %431 = vmatprep.subr.mxu0 0.0
        %432 = vmatpush1.msra.mxu0 0.0
        %433 = vmatprep.subr.mxu0 0.0
        %434 = vmatpush1.msra.mxu0 0.0
        %435 = vmatprep.subr.mxu0 0.0
        %436 = vmatpush1.msra.mxu0 0.0
        %437 = vmatprep.subr.mxu0 0.0
        %438 = vmatpush1.msra.mxu0 0.0
        %439 = vmatprep.subr.mxu0 0.0
        %440 = vmatpush1.msra.mxu0 0.0
        %441 = vmatprep.subr.mxu0 0.0
        %442 = vmatpush1.msra.mxu0 0.0
        %443 = vmatprep.subr.mxu0 0.0
        %444 = vmatpush1.msra.mxu0 0.0
        %445 = vmatprep.subr.mxu0 0.0
        %446 = vmatpush1.msra.mxu0 0.0
        %447 = vmatprep.subr.mxu0 0.0
        %448 = vmatpush1.msra.mxu0 0.0
        %449 = vmatprep.subr.mxu0 0.0
        %450 = vmatpush1.msra.mxu0 0.0
        %451 = vmatprep.subr.mxu0 0.0
        %452 = vmatpush1.msra.mxu0 0.0
        %453 = vmatprep.subr.mxu0 0.0
        %454 = vmatpush1.msra.mxu0 0.0
        %455 = vmatprep.mubr.f32.mxu0 0.0
        %456 = vmatmul.mubr.f32.gmra.mrb[0].mxu0 %v383
        %v457 = vpop.f32.mrb[0].mxu0
        %v458 = vadd.f32 %v374, %v457
        %v459 = vpop.f32.mrb[0].mxu0
        %460 = vmatprep.mubr.f32.mxu0 0.0
        %461 = vmatmul.mubr.f32.gmra.mrb[0].mxu0 %v386
        %v462 = vpop.f32.mrb[0].mxu0
        %v463 = vadd.f32 %v379, %v462
        %v464 = vpop.f32.mrb[0].mxu0
        %465 = vdwg.mxu0
        %v466 = vrot.slane %v285, 2
        %v467 = vrot.slane %v286, 2
        %vm468 = vcmp.lt.s32.totalorder %v291, 6
        %v469 = vsel %vm468, %v466, %v467
        %v470 = vsel %vm468, %v467, %v466
        %v471 = vld [vmem:[%s0 + $0x8] sm:$0xf]
        %v473 = vsel %vm296, %v469, 0
        %v476 = vsel %vm296, %v470, 0
        %v479 = vsel %vm303, %v471, 0
        %481 = vmatprep.subr.mxu0 0.0
        %482 = vmatpush1.msra.mxu0 %v479
        %483 = vmatprep.subr.mxu0 0.0
        %484 = vmatpush1.msra.mxu0 0.0
        %485 = vmatprep.subr.mxu0 0.0
        %486 = vmatpush1.msra.mxu0 0.0
        %487 = vmatprep.subr.mxu0 0.0
        %488 = vmatpush1.msra.mxu0 0.0
        %489 = vmatprep.subr.mxu0 0.0
        %490 = vmatpush1.msra.mxu0 0.0
        %491 = vmatprep.subr.mxu0 0.0
        %492 = vmatpush1.msra.mxu0 0.0
        %493 = vmatprep.subr.mxu0 0.0
        %494 = vmatpush1.msra.mxu0 0.0
        %495 = vmatprep.subr.mxu0 0.0
        %496 = vmatpush1.msra.mxu0 0.0
        %497 = vmatprep.subr.mxu0 0.0
        %498 = vmatpush1.msra.mxu0 0.0
        %499 = vmatprep.subr.mxu0 0.0
        %500 = vmatpush1.msra.mxu0 0.0
        %501 = vmatprep.subr.mxu0 0.0
        %502 = vmatpush1.msra.mxu0 0.0
        %503 = vmatprep.subr.mxu0 0.0
        %504 = vmatpush1.msra.mxu0 0.0
        %505 = vmatprep.subr.mxu0 0.0
        %506 = vmatpush1.msra.mxu0 0.0
        %507 = vmatprep.subr.mxu0 0.0
        %508 = vmatpush1.msra.mxu0 0.0
        %509 = vmatprep.subr.mxu0 0.0
        %510 = vmatpush1.msra.mxu0 0.0
        %511 = vmatprep.subr.mxu0 0.0
        %512 = vmatpush1.msra.mxu0 0.0
        %513 = vmatprep.subr.mxu0 0.0
        %514 = vmatpush1.msra.mxu0 0.0
        %515 = vmatprep.subr.mxu0 0.0
        %516 = vmatpush1.msra.mxu0 0.0
        %517 = vmatprep.subr.mxu0 0.0
        %518 = vmatpush1.msra.mxu0 0.0
        %519 = vmatprep.subr.mxu0 0.0
        %520 = vmatpush1.msra.mxu0 0.0
        %521 = vmatprep.subr.mxu0 0.0
        %522 = vmatpush1.msra.mxu0 0.0
        %523 = vmatprep.subr.mxu0 0.0
        %524 = vmatpush1.msra.mxu0 0.0
        %525 = vmatprep.subr.mxu0 0.0
        %526 = vmatpush1.msra.mxu0 0.0
        %527 = vmatprep.subr.mxu0 0.0
        %528 = vmatpush1.msra.mxu0 0.0
        %529 = vmatprep.subr.mxu0 0.0
        %530 = vmatpush1.msra.mxu0 0.0
        %531 = vmatprep.subr.mxu0 0.0
        %532 = vmatpush1.msra.mxu0 0.0
        %533 = vmatprep.subr.mxu0 0.0
        %534 = vmatpush1.msra.mxu0 0.0
        %535 = vmatprep.subr.mxu0 0.0
        %536 = vmatpush1.msra.mxu0 0.0
        %537 = vmatprep.subr.mxu0 0.0
        %538 = vmatpush1.msra.mxu0 0.0
        %539 = vmatprep.subr.mxu0 0.0
        %540 = vmatpush1.msra.mxu0 0.0
        %541 = vmatprep.subr.mxu0 0.0
        %542 = vmatpush1.msra.mxu0 0.0
        %543 = vmatprep.subr.mxu0 0.0
        %544 = vmatpush1.msra.mxu0 0.0
        %545 = vmatprep.mubr.f32.mxu0 0.0
        %546 = vmatmul.mubr.f32.gmra.mrb[0].mxu0 %v473
        %v547 = vpop.f32.mrb[0].mxu0
        %v548 = vadd.f32 0.0, %v547
        %v549 = vpop.f32.mrb[0].mxu0
        %550 = vmatprep.mubr.f32.mxu0 0.0
        %551 = vmatmul.mubr.f32.gmra.mrb[0].mxu0 %v476
        %v552 = vpop.f32.mrb[0].mxu0
        %v553 = vadd.f32 0.0, %v552
        %v554 = vpop.f32.mrb[0].mxu0
        %555 = vdwg.mxu0
        %v556 = vadd.f32 %v458, %v548
        %v557 = vadd.f32 %v463, %v553
        %v558 = vadd.s32 %v291, 8
        %vm559 = vcmp.lt.s32.totalorder %v291, 14
        %vm560 = vcmp.lt.s32.totalorder %v558, 14
        %v561 = vsel %vm559, %v556, 0.0
        %v562 = vsel %vm560, %v557, 0.0
        %v563 = vmax.f32 %v561, %v562
        %v564 = vrot.slane %v563, 4
        %v565 = vmax.f32 %v563, %v564
        %v566 = vrot.slane %v565, 2
        %v567 = vmax.f32 %v565, %v566
        %v568 = vrot.slane %v567, 1
        %v569 = vmax.f32 %v567, %v568
        %v570 = vld [vmem:[#allocation3] sm:$0x1]
        %v571 = vmax.f32 %v570, %v569
        %572 = vst [vmem:[#allocation3] sm:$0x1] %v571
        %v573 = vld [vmem:[#allocation11] sm:$0xff]
        %574 = vst.msk [vmem:[#allocation2] sm:$0xff] %vm296, %v573
        %p575 = scmp.eq.s32.totalorder %s24, 2
        // Predicated region
        $region37: #{conv1d_maxpool_relu.2} parent=31 // pred_check
          %p576 = pneg %p575
        $region38: #{conv1d_maxpool_relu.2} parent=31 // pred_check_branch
          %578 = sbr.rel (%p576) target = $region40
        $region39: #{conv1d_maxpool_relu.2} parent=31 // pred_region
          %v579 = vld [vmem:[#allocation3] sm:$0x1]
          %v580 = vld [vmem:[%s1] sm:$0x1]
          %v581 = vadd.f32 %v579, %v580
          %v582 = vmax.f32 %v581, 0.0
          %583 = vst [vmem:[%s210] sm:$0x1] %v582
        $region40: #{conv1d_maxpool_relu.2} parent=31 // pred_fallthru
          _
        %s584 = sand.u32 %s109, 1
        %s585 = scalar_lea.sflag [#allocation10], %s584
        %s586 = sand.u32 %s109, 1
        %s587 = scalar_lea.vmem [#allocation9], %s586
        // Predicated region
        $region41: #{conv1d_maxpool_relu.2} parent=31 // pred_check
          %p588 = pneg %p119
        $region42: #{conv1d_maxpool_relu.2} parent=31 // pred_check_branch
          %590 = sbr.rel (%p588) target = $region44
        $region43: #{conv1d_maxpool_relu.2} parent=31 // pred_region
          %s592 = ssub.s32 16, 16
          %593 = vsyncadd %s585, %s592
          %s594 = smul.addr %s23, 16
          %s595 = scalar_lea.hbm %s4, %s594
          %s597 = sshll.u32 %s587, 4
          %s598 = int_to_ptr.vmem [resolvable:$true] %s597
          %600 = dma.vmem_to_hbm [thread:$0]  %s598, 16, %s595, %s585
        $region44: #{conv1d_maxpool_relu.2} parent=31 // pred_fallthru
          _
      $region32: #{conv1d_maxpool_relu.2} parent=5 // pred_fallthru
        _
      %p601 = scmp.le.s32.totalorder 2, %s14
      // Predicated region
      $region45: #{conv1d_maxpool_relu.2} parent=5 // pred_check
        %p602 = pneg %p601
      $region46: #{conv1d_maxpool_relu.2} parent=5 // pred_check_branch
        %604 = sbr.rel (%p602) target = $region48
      $region47: #{conv1d_maxpool_relu.2} parent=5 // pred_region
        %s605 = ssub.s32 %s14, 2
        // Predicated region
        $region49: #{conv1d_maxpool_relu.2} parent=47 // pred_check
          %p606 = pneg %p125
        $region50: #{conv1d_maxpool_relu.2} parent=47 // pred_check_branch
          %608 = sbr.rel (%p606) target = $region52
        $region51: #{conv1d_maxpool_relu.2} parent=47 // pred_region
          %s609 = sand.u32 %s110, 1
          %s610 = scalar_lea.sflag [#allocation10], %s609
          %s611 = sand.u32 %s110, 1
          %s612 = scalar_lea.vmem [#allocation9], %s611
          %613 = dma.done %s610, 16
        $region52: #{conv1d_maxpool_relu.2} parent=47 // pred_fallthru
          _
      $region48: #{conv1d_maxpool_relu.2} parent=5 // pred_fallthru
        _
    $region6: #{conv1d_maxpool_relu.2} parent=1 // loop_footer
      %s18 = sadd.s32 1, %s14
    $region7: #{conv1d_maxpool_relu.2} parent=1 // loop_footer_branch
      %13 = sbr.rel target = $region3
    $region8: #{conv1d_maxpool_relu.2} parent=1 // loop_exit
      _
    %614 = vsyncpa [#allocation10], 1
    %s615 = scalar_lea.sflag [#allocation10], 1
    %616 = vsyncpa %s615, 1

</llo_original>
